<compile_context>
chip_gen: v6e
topology: v6e:2x2x1
jax: 0.10.0
libtpu: 0.0.40
codegen_flags: <defaults>
</compile_context>

<pallas_src>
import functools

import jax
import jax.numpy as jnp
import numpy as np
from jax import lax
from jax.experimental import pallas as pl
from jax.experimental.pallas import tpu as pltpu

EPS = 1e-5


# ----------------------------------------------------------------------------
# Per-generation VMEM budget: (scoped vmem limit, target bytes per x block).
# ----------------------------------------------------------------------------
def _vmem_budget():
    phys = None
    try:
        info = pltpu.get_tpu_info()
        phys = getattr(info, "vmem_capacity_bytes", None)
    except Exception:
        phys = None
    if not phys:
        phys = 64 << 20                      # conservative: v7x per-core VMEM
    if phys >= (100 << 20):                  # v5e / v6e: 128 MiB physical VMEM
        return 96 << 20, 8 << 20
    return 48 << 20, 4 << 20                 # v7x-class: 64 MiB physical VMEM


def _largest_divisor_leq(n, cap):
    cap = int(max(1, min(n, cap)))
    for d in range(cap, 0, -1):
        if n % d == 0:
            return d
    return 1


# ----------------------------------------------------------------------------
# Pass 1 (training only): per-channel sum and sum-of-squares.
# x viewed as (N, C, HW); block = (nb, C, tl).  Lane-wide (C, tl) scratch
# accumulators (elementwise VPU adds per step); the cross-lane reduce and the
# (1, C, 1) partial-output store happen once per N-block in a pl.when epilogue.
# The N grid axis is "parallel" (megacore on v7x); partials are summed outside.
# ----------------------------------------------------------------------------
def _stats_kernel(x_ref, sum_ref, sq_ref, acc_s, acc_q, *, tl, hw, mask_lanes):
    l = pl.program_id(1)

    @pl.when(l == 0)
    def _():
        acc_s[...] = jnp.zeros_like(acc_s)
        acc_q[...] = jnp.zeros_like(acc_q)

    x = x_ref[...].astype(jnp.float32)                   # (nb, C, tl)
    if mask_lanes:
        # Last lane-block is padded with garbage: mask it out of the sums.
        lane = lax.broadcasted_iota(jnp.int32, x.shape, 2)
        x = jnp.where(l * tl + lane < hw, x, 0.0)

    acc_s[...] += jnp.sum(x, axis=0)                     # (C, tl) VPU adds
    acc_q[...] += jnp.sum(x * x, axis=0)

    @pl.when(l == pl.num_programs(1) - 1)
    def _():
        sum_ref[...] = jnp.sum(acc_s[...], axis=1, keepdims=True)[None]
        sq_ref[...] = jnp.sum(acc_q[...], axis=1, keepdims=True)[None]


def _channel_sums(x3, nb, tl, vmem_limit):
    N, C, HW = x3.shape
    gn = N // nb                                         # nb always divides N
    gl = pl.cdiv(HW, tl)
    x_bytes = int(x3.size) * x3.dtype.itemsize
    kernel = functools.partial(_stats_kernel, tl=tl, hw=HW,
                               mask_lanes=(HW % tl) != 0)
    return pl.pallas_call(
        kernel,
        out_shape=(jax.ShapeDtypeStruct((gn, C, 1), jnp.float32),
                   jax.ShapeDtypeStruct((gn, C, 1), jnp.float32)),
        grid=(gn, gl),
        in_specs=[pl.BlockSpec((nb, C, tl), lambda n, l: (n, 0, l))],
        out_specs=(pl.BlockSpec((1, C, 1), lambda n, l: (n, 0, 0)),
                   pl.BlockSpec((1, C, 1), lambda n, l: (n, 0, 0))),
        scratch_shapes=[pltpu.VMEM((C, tl), jnp.float32),
                        pltpu.VMEM((C, tl), jnp.float32)],
        compiler_params=pltpu.CompilerParams(
            dimension_semantics=("parallel", "arbitrary"),
            vmem_limit_bytes=vmem_limit),
        cost_estimate=pl.CostEstimate(flops=3 * N * C * HW, transcendentals=0,
                                      bytes_accessed=x_bytes),
    )(x3)


# ----------------------------------------------------------------------------
# Pass 2: y = x * scale + shift.  One kernel body serves both layouts:
#   3-D path: x block (nb, C, tl), scale/shift blocks (C, 1)   (HW % 128 == 0)
#   2-D path: x block (nb, tl),    scale/shift blocks (1, tl)  (C folded in lanes)
# ----------------------------------------------------------------------------
def _affine_kernel(x_ref, s_ref, b_ref, o_ref):
    x = x_ref[...].astype(jnp.float32)
    o_ref[...] = (x * s_ref[...] + b_ref[...]).astype(o_ref.dtype)


def _affine_3d(x3, scale_c1, shift_c1, nb, tl, vmem_limit):
    N, C, HW = x3.shape
    x_bytes = int(x3.size) * x3.dtype.itemsize
    return pl.pallas_call(
        _affine_kernel,
        out_shape=jax.ShapeDtypeStruct((N, C, HW), x3.dtype),
        grid=(N // nb, pl.cdiv(HW, tl)),
        in_specs=[pl.BlockSpec((nb, C, tl), lambda n, l: (n, 0, l)),
                  pl.BlockSpec((C, 1), lambda n, l: (0, 0)),
                  pl.BlockSpec((C, 1), lambda n, l: (0, 0))],
        out_specs=pl.BlockSpec((nb, C, tl), lambda n, l: (n, 0, l)),
        compiler_params=pltpu.CompilerParams(
            dimension_semantics=("parallel", "parallel"),
            vmem_limit_bytes=vmem_limit),
        cost_estimate=pl.CostEstimate(flops=2 * N * C * HW, transcendentals=0,
                                      bytes_accessed=2 * x_bytes),
    )(x3, scale_c1, shift_c1)


def _affine_2d(x2, scale_row, shift_row, nb, tl, vmem_limit):
    N, L = x2.shape
    x_bytes = int(x2.size) * x2.dtype.itemsize
    return pl.pallas_call(
        _affine_kernel,
        out_shape=jax.ShapeDtypeStruct((N, L), x2.dtype),
        grid=(pl.cdiv(N, nb), pl.cdiv(L, tl)),
        in_specs=[pl.BlockSpec((nb, tl), lambda n, l: (n, l)),
                  pl.BlockSpec((1, tl), lambda n, l: (0, l)),
                  pl.BlockSpec((1, tl), lambda n, l: (0, l))],
        out_specs=pl.BlockSpec((nb, tl), lambda n, l: (n, l)),
        compiler_params=pltpu.CompilerParams(
            dimension_semantics=("parallel", "parallel"),
            vmem_limit_bytes=vmem_limit),
        cost_estimate=pl.CostEstimate(flops=2 * N * L, transcendentals=0,
                                      bytes_accessed=2 * x_bytes),
    )(x2, scale_row, shift_row)


# ----------------------------------------------------------------------------
# Fused single-read training path: whole (N, C, HW) tensor resident in VMEM.
# Uses a centered (numerically safe) variance since x is already on-chip.
# ----------------------------------------------------------------------------
def _fused_train_kernel(x_ref, g_ref, b_ref, o_ref, *, eps, inv_m):
    x = x_ref[...].astype(jnp.float32)                   # (N, C, HW)
    mean = jnp.sum(jnp.sum(x, axis=2, keepdims=True), axis=0, keepdims=True) * inv_m
    xc = x - mean
    var = jnp.sum(jnp.sum(xc * xc, axis=2, keepdims=True), axis=0,
                  keepdims=True) * inv_m
    scale = g_ref[...][None] * lax.rsqrt(var + eps)      # (1, C, 1)
    shift = b_ref[...][None] - mean * scale
    o_ref[...] = (x * scale + shift).astype(o_ref.dtype)


def _fused_train(x3, gamma_c1, beta_c1, eps, vmem_limit):
    N, C, HW = x3.shape
    x_bytes = int(x3.size) * x3.dtype.itemsize
    kernel = functools.partial(_fused_train_kernel, eps=float(eps),
                               inv_m=1.0 / float(N * HW))
    return pl.pallas_call(
        kernel,
        out_shape=jax.ShapeDtypeStruct((N, C, HW), x3.dtype),
        grid=(1,),
        in_specs=[pl.BlockSpec((N, C, HW), lambda i: (0, 0, 0)),
                  pl.BlockSpec((C, 1), lambda i: (0, 0)),
                  pl.BlockSpec((C, 1), lambda i: (0, 0))],
        out_specs=pl.BlockSpec((N, C, HW), lambda i: (0, 0, 0)),
        compiler_params=pltpu.CompilerParams(
            dimension_semantics=("arbitrary",),
            vmem_limit_bytes=vmem_limit),
        cost_estimate=pl.CostEstimate(flops=8 * N * C * HW, transcendentals=2 * C,
                                      bytes_accessed=2 * x_bytes),
    )(x3, gamma_c1, beta_c1)


# ----------------------------------------------------------------------------
# Tile selection.
# ----------------------------------------------------------------------------
def _stats_tiles(N, C, HW, tgt_block):
    acc_cap = 4 << 20        # cap on each (C, tl) f32 accumulator scratch
    if HW % 128 == 0:
        tl = min(HW, max(128, ((acc_cap // (C * 4)) // 128) * 128))
    else:
        tl = HW              # full lane axis (block dim == array dim is legal)
    nb = _largest_divisor_leq(N, max(1, tgt_block // max(1, C * tl * 4)))
    return nb, tl


def _affine_tiles_3d(N, C, HW, tgt_block):
    tl = min(HW, max(128, ((tgt_block // (C * 4)) // 128) * 128))
    nb = _largest_divisor_leq(N, max(1, tgt_block // max(1, C * tl * 4)))
    return nb, tl


def _affine_tiles_2d(N, L, tgt_block):
    if L % 128 == 0:
        tl = min(L, max(128, ((tgt_block // 4) // 128) * 128))
    else:
        tl = L
    rows = max(1, tgt_block // max(1, tl * 4))
    if N < 8:
        nb = N               # full first dim satisfies the (8, 128) rule
    else:
        nb = max(8, min((N // 8) * 8, (rows // 8) * 8))
    return nb, tl


# ----------------------------------------------------------------------------
# Wrapper: forward of _ConditionalBatchNorm.
# ----------------------------------------------------------------------------
def conditional_batch_norm(x_nchw, label, weight, bias,
                           running_mean, running_var,
                           training=True, eps=EPS, allow_fused=True):
    N, C, H, W = x_nchw.shape
    HW = H * W
    vmem_limit, tgt_block = _vmem_budget()

    # Tiny (1,K)@(K,C) label-mixing GEMVs, hoisted out of the hot kernels.
    label2 = label.reshape(1, -1).astype(jnp.float32)
    gamma = (label2 @ weight.astype(jnp.float32))[0]      # (C,)
    beta = (label2 @ bias.astype(jnp.float32))[0]         # (C,)

    x3 = x_nchw.reshape(N, C, HW)
    xf32_bytes = N * C * HW * 4

    if training:
        if allow_fused and xf32_bytes <= (4 << 20) and xf32_bytes * 6 <= vmem_limit:
            out3 = _fused_train(x3, gamma.reshape(C, 1), beta.reshape(C, 1),
                                eps, vmem_limit)
            return out3.reshape(N, C, H, W)
        # Streaming pass 1: per-channel sums with per-N-block partials.
        nb_s, tl_s = _stats_tiles(N, C, HW, tgt_block)
        psum, psq = _channel_sums(x3, nb_s, tl_s, vmem_limit)
        csum = jnp.sum(psum[:, :, 0], axis=0)             # (C,)
        csq = jnp.sum(psq[:, :, 0], axis=0)
        m = float(N * HW)
        mean = csum / m
        # TODO(synk): E[x^2]-E[x]^2 in f32 loses precision when |mean| >> std;
        # the fused path uses a centered variance, a Welford pass could too.
        var = jnp.maximum(csq / m - mean * mean, 0.0)      # biased variance
    else:
        mean = (label2 @ running_mean.astype(jnp.float32))[0]
        var = (label2 @ running_var.astype(jnp.float32))[0]

    scale_c = gamma * lax.rsqrt(var + eps)                 # (C,)
    shift_c = beta - mean * scale_c                        # (C,)

    if HW % 128 == 0:
        # Lane-dense 3-D normalize with per-channel (C,1) scale/shift blocks.
        nb_a, tl_a = _affine_tiles_3d(N, C, HW, tgt_block)
        out3 = _affine_3d(x3, scale_c.reshape(C, 1), shift_c.reshape(C, 1),
                          nb_a, tl_a, vmem_limit)
        return out3.reshape(N, C, H, W)

    # Small / non-128-aligned spatial maps: fold C into the lane axis so output
    # blocks stay lane-dense; scale/shift become a single per-lane row.
    L = C * HW
    srow = jnp.repeat(scale_c, HW).reshape(1, L)
    brow = jnp.repeat(shift_c, HW).reshape(1, L)
    nb_a, tl_a = _affine_tiles_2d(N, L, tgt_block)
    out2 = _affine_2d(x_nchw.reshape(N, L), srow, brow, nb_a, tl_a, vmem_limit)
    return out2.reshape(N, C, H, W)


# ----------------------------------------------------------------------------
# Pure-JAX reference matching F.batch_norm semantics.
# ----------------------------------------------------------------------------
def _reference(x, label, weight, bias, rm, rv, training):
    gamma = label @ weight
    beta = label @ bias
    if training:
        mean = jnp.mean(x, axis=(0, 2, 3))
        var = jnp.var(x, axis=(0, 2, 3))  # biased
    else:
        mean = label @ rm
        var = label @ rv
    xn = (x - mean[None, :, None, None]) / jnp.sqrt(var[None, :, None, None] + EPS)
    return xn * gamma[None, :, None, None] + beta[None, :, None, None]


if __name__ == "__main__":
    key = jax.random.PRNGKey(0)
    k_x, k_w, k_b, k_lbl, k_x2, k_w2, k_lbl2 = jax.random.split(key, 7)

    cbn = jax.jit(conditional_batch_norm,
                  static_argnames=("training", "allow_fused"))

    # --- case 1: num_features=4, 16x16 maps, one-hot label -------------------
    N, C, H, W = 2, 4, 16, 16
    K = 3
    x = jax.random.normal(k_x, (N, C, H, W), dtype=jnp.float32)
    # Module init: weight ~ U[0,1), bias = 0, running_mean = 0, running_var = 1.
    weight = jax.random.uniform(k_w, (K, C), dtype=jnp.float32)
    bias = jnp.zeros((K, C), dtype=jnp.float32)
    running_mean = jnp.zeros((K, C), dtype=jnp.float32)
    running_var = jnp.ones((K, C), dtype=jnp.float32)
    label = jax.nn.one_hot(jax.random.randint(k_lbl, (), 0, K), K,
                           dtype=jnp.float32)

    # Training, fused single-read path.
    y = jax.block_until_ready(cbn(x, label, weight, bias, running_mean,
                                  running_var, training=True))
    ref = _reference(x, label, weight, bias, running_mean, running_var, True)
    np.testing.assert_allclose(np.asarray(y), np.asarray(ref),
                               rtol=1e-4, atol=1e-4)

    # Training, two-pass streaming path (stats kernel + lane-dense 3-D affine).
    y = jax.block_until_ready(cbn(x, label, weight, bias, running_mean,
                                  running_var, training=True, allow_fused=False))
    np.testing.assert_allclose(np.asarray(y), np.asarray(ref),
                               rtol=1e-4, atol=1e-4)

    # Eval: running statistics selected via the label matmul.
    y = jax.block_until_ready(cbn(x, label, weight, bias, running_mean,
                                  running_var, training=False))
    ref_e = _reference(x, label, weight, bias, running_mean, running_var, False)
    np.testing.assert_allclose(np.asarray(y), np.asarray(ref_e),
                               rtol=1e-4, atol=1e-4)

    # --- case 2: 7x7 maps (lane axis not a multiple of 128), soft label ------
    N2, C2, H2, W2 = 2, 8, 7, 7
    K2 = 5
    x2 = jax.random.normal(k_x2, (N2, C2, H2, W2), dtype=jnp.float32)
    w2 = jax.random.uniform(k_w2, (K2, C2), dtype=jnp.float32)
    b2 = jax.random.normal(k_b, (K2, C2), dtype=jnp.float32) * 0.1
    rm2 = jnp.zeros((K2, C2), dtype=jnp.float32)
    rv2 = jnp.ones((K2, C2), dtype=jnp.float32)
    lbl2 = jax.nn.softmax(jax.random.normal(k_lbl2, (K2,), dtype=jnp.float32))

    y2 = jax.block_until_ready(cbn(x2, lbl2, w2, b2, rm2, rv2,
                                   training=True, allow_fused=False))
    ref2 = _reference(x2, lbl2, w2, b2, rm2, rv2, True)
    np.testing.assert_allclose(np.asarray(y2), np.asarray(ref2),
                               rtol=1e-4, atol=1e-4)

    print("KERNEL_OK")
</pallas_src>

<mosaic_0001>
module attributes {stable_mosaic.version = 11 : i64} {
  func.func @_fused_train_kernel(%arg0: i32, %arg1: memref<2x4x256xf32, #tpu.memory_space<vmem>>, %arg2: memref<4x1xf32, #tpu.memory_space<vmem>>, %arg3: memref<4x1xf32, #tpu.memory_space<vmem>>, %arg4: memref<2x4x256xf32, #tpu.memory_space<vmem>>) attributes {dimension_semantics = [#tpu.dimension_semantics<arbitrary>], iteration_bounds = array<i64: 1>, scalar_prefetch = 0 : i64, scratch_operands = 0 : i64, tpu.core_type = #tpu.core_type<tc>, window_params = [{pipeline_mode = #tpu.pipeline_mode<synchronous>, transform_indices = @transform_0, window_bounds = array<i64: 2, 4, 256>}, {pipeline_mode = #tpu.pipeline_mode<synchronous>, transform_indices = @transform_1, window_bounds = array<i64: 4, 1>}, {pipeline_mode = #tpu.pipeline_mode<synchronous>, transform_indices = @transform_2, window_bounds = array<i64: 4, 1>}, {pipeline_mode = #tpu.pipeline_mode<synchronous>, transform_indices = @transform_3, window_bounds = array<i64: 2, 4, 256>}]} {
    %c0 = arith.constant 0 : index
    %c0_0 = arith.constant 0 : index
    %c0_1 = arith.constant 0 : index
    %0 = vector.load %arg1[%c0, %c0_0, %c0_1] : memref<2x4x256xf32, #tpu.memory_space<vmem>>, vector<2x4x256xf32>
    %cst = arith.constant dense<0.000000e+00> : vector<2x4xf32>
    %1 = vector.multi_reduction <add>, %0, %cst [2] : vector<2x4x256xf32> to vector<2x4xf32>
    %2 = vector.shape_cast %1 : vector<2x4xf32> to vector<2x4x1xf32>
    %cst_2 = arith.constant dense<0.000000e+00> : vector<4x1xf32>
    %3 = vector.multi_reduction <add>, %2, %cst_2 [0] : vector<2x4x1xf32> to vector<4x1xf32>
    %4 = vector.shape_cast %3 : vector<4x1xf32> to vector<1x4x1xf32>
    %cst_3 = arith.constant 0.001953125 : f32
    %5 = vector.broadcast %cst_3 : f32 to vector<1x4x1xf32>
    %6 = arith.mulf %4, %5 : vector<1x4x1xf32>
    %7 = vector.broadcast %6 : vector<1x4x1xf32> to vector<2x4x256xf32>
    %8 = arith.subf %0, %7 : vector<2x4x256xf32>
    %9 = arith.mulf %8, %8 : vector<2x4x256xf32>
    %cst_4 = arith.constant dense<0.000000e+00> : vector<2x4xf32>
    %10 = vector.multi_reduction <add>, %9, %cst_4 [2] : vector<2x4x256xf32> to vector<2x4xf32>
    %11 = vector.shape_cast %10 : vector<2x4xf32> to vector<2x4x1xf32>
    %cst_5 = arith.constant dense<0.000000e+00> : vector<4x1xf32>
    %12 = vector.multi_reduction <add>, %11, %cst_5 [0] : vector<2x4x1xf32> to vector<4x1xf32>
    %13 = vector.shape_cast %12 : vector<4x1xf32> to vector<1x4x1xf32>
    %cst_6 = arith.constant 0.001953125 : f32
    %14 = vector.broadcast %cst_6 : f32 to vector<1x4x1xf32>
    %15 = arith.mulf %13, %14 : vector<1x4x1xf32>
    %c0_7 = arith.constant 0 : index
    %c0_8 = arith.constant 0 : index
    %16 = vector.load %arg2[%c0_7, %c0_8] : memref<4x1xf32, #tpu.memory_space<vmem>>, vector<4x1xf32>
    %17 = vector.shape_cast %16 : vector<4x1xf32> to vector<1x4x1xf32>
    %cst_9 = arith.constant 9.99999974E-6 : f32
    %18 = vector.broadcast %cst_9 : f32 to vector<1x4x1xf32>
    %19 = arith.addf %15, %18 : vector<1x4x1xf32>
    %20 = math.rsqrt %19 : vector<1x4x1xf32>
    %21 = arith.mulf %17, %20 : vector<1x4x1xf32>
    %c0_10 = arith.constant 0 : index
    %c0_11 = arith.constant 0 : index
    %22 = vector.load %arg3[%c0_10, %c0_11] : memref<4x1xf32, #tpu.memory_space<vmem>>, vector<4x1xf32>
    %23 = vector.shape_cast %22 : vector<4x1xf32> to vector<1x4x1xf32>
    %24 = arith.mulf %6, %21 : vector<1x4x1xf32>
    %25 = arith.subf %23, %24 : vector<1x4x1xf32>
    %26 = vector.broadcast %21 : vector<1x4x1xf32> to vector<2x4x256xf32>
    %27 = arith.mulf %0, %26 : vector<2x4x256xf32>
    %28 = vector.broadcast %25 : vector<1x4x1xf32> to vector<2x4x256xf32>
    %29 = arith.addf %27, %28 : vector<2x4x256xf32>
    %c0_12 = arith.constant 0 : index
    %c0_13 = arith.constant 0 : index
    %c0_14 = arith.constant 0 : index
    %30 = vector.load %arg4[%c0_12, %c0_13, %c0_14] : memref<2x4x256xf32, #tpu.memory_space<vmem>>, vector<2x4x256xf32>
    tpu.vector_store %arg4[%c0_12, %c0_13, %c0_14], %29 {strides = array<i32>} : memref<2x4x256xf32, #tpu.memory_space<vmem>>, vector<2x4x256xf32>,
    return
  }
  func.func @transform_0(%arg0: i32) -> (i32, i32, i32) {
    %c0_i32 = arith.constant 0 : i32
    %c0_i32_0 = arith.constant 0 : i32
    %c0_i32_1 = arith.constant 0 : i32
    %c0_i32_2 = arith.constant 0 : i32
    return %c0_i32, %c0_i32_0, %c0_i32_1 : i32, i32, i32
  }
  func.func @transform_1(%arg0: i32) -> (i32, i32) {
    %c0_i32 = arith.constant 0 : i32
    %c0_i32_0 = arith.constant 0 : i32
    %c0_i32_1 = arith.constant 0 : i32
    return %c0_i32, %c0_i32_0 : i32, i32
  }
  func.func @transform_2(%arg0: i32) -> (i32, i32) {
    %c0_i32 = arith.constant 0 : i32
    %c0_i32_0 = arith.constant 0 : i32
    %c0_i32_1 = arith.constant 0 : i32
    return %c0_i32, %c0_i32_0 : i32, i32
  }
  func.func @transform_3(%arg0: i32) -> (i32, i32, i32) {
    %c0_i32 = arith.constant 0 : i32
    %c0_i32_0 = arith.constant 0 : i32
    %c0_i32_1 = arith.constant 0 : i32
    %c0_i32_2 = arith.constant 0 : i32
    return %c0_i32, %c0_i32_0, %c0_i32_1 : i32, i32, i32
  }
}

</mosaic_0001>

<llo_original>
// kernel: conditional_batch_norm.1
$region0: #{conditional_batch_norm.1}
  #allocation0 [shape = 'u32[]', space=smem, size = 0x4, offset = 0x4, fixed_abs, tag = 'smem constant byte address 0x4 - core index']
  #allocation1 [shape = 'u32[144,128]{1,0:T(1,128)}', space=vmem, size = 0x12000, scoped, tag = 'internal scratch']
  %s0 = inlined_call_operand.vmem [shape: f32[2,4,256], index: 0, kind: input, shape index: {}]
  %s1 = inlined_call_operand.vmem [shape: f32[4,1], index: 1, kind: input, shape index: {}]
  %s2 = inlined_call_operand.vmem [shape: f32[4,1], index: 2, kind: input, shape index: {}]
  %s3 = inlined_call_operand.vmem [shape: f32[2,4,256], index: 3, kind: output, shape index: {}]
  %s4 = sld [smem:[#allocation0]]
  $region22: #{conditional_batch_norm.1} parent=0
    _
  %s6 = ssub.s32 1, %s4
  %s7 = scalar_select 0, %s6, %s4
  // Predicated region
  $region2: #{conditional_batch_norm.1} parent=0 // pred_check
    _
  $region3: #{conditional_batch_norm.1} parent=0 // pred_check_branch
    %9 = sbr.rel (0) target = $region5
  $region4: #{conditional_batch_norm.1} parent=0 // pred_region
    _
  $region5: #{conditional_batch_norm.1} parent=0 // pred_fallthru
    _
  // Predicated region
  $region6: #{conditional_batch_norm.1} parent=0 // pred_check
    _
  $region7: #{conditional_batch_norm.1} parent=0 // pred_check_branch
    %11 = sbr.rel (0) target = $region9
  $region8: #{conditional_batch_norm.1} parent=0 // pred_region
    _
  $region9: #{conditional_batch_norm.1} parent=0 // pred_fallthru
    _
  // Predicated region
  $region10: #{conditional_batch_norm.1} parent=0 // pred_check
    _
  $region11: #{conditional_batch_norm.1} parent=0 // pred_check_branch
    %13 = sbr.rel (0) target = $region13
  $region12: #{conditional_batch_norm.1} parent=0 // pred_region
    _
  $region13: #{conditional_batch_norm.1} parent=0 // pred_fallthru
    _
  %v14 = vld [vmem:[%s0] sm:$0xff]
  %v15 = vld [vmem:[%s0 + $0x8] sm:$0xff]
  %v18 = vcombine.high %v14, %v14
  %v19 = vcombine.high %v15, %v15
  %vm22 = vcmask 1043456
  %v23 = vsel %vm22, %v14, 0.0
  %v24 = vsel %vm22, %v18, 0.0
  %v25 = vadd.f32 %v23, %v24
  %26 = vadd.xlane.f32.xlu0 %v25
  %v27 = vpop.xlane.xlu0 %26
  %v28 = vsel %vm22, %v15, 0.0
  %v29 = vsel %vm22, %v19, 0.0
  %v30 = vadd.f32 %v28, %v29
  %31 = vadd.xlane.f32.xlu0 %v30
  %v32 = vpop.xlane.xlu0 %31
  %v33 = vsel %vm22, %v27, 0.0
  %v34 = vsel %vm22, %v32, 0.0
  %v35 = vadd.f32 %v33, %v34
  %v36 = vmul.f32 %v35, 0.001953125
  %v39 = vunpack.c.l.s4 839922192
  %v40 = vunpack.c.0.s8 %v39
  %v41 = vlaneseq
  %v42 = vshrl.u32 %v41, 7
  %v43 = vsub.s32 %v40, %v42
  %v44 = vrot.slane %v36, %v43
  %v46 = vsub.f32 %v14, %v44
  %v47 = vsub.f32 %v15, %v44
  %v48 = vmul.f32 %v46, %v46
  %v49 = vmul.f32 %v47, %v47
  %v52 = vcombine.high %v48, %v48
  %v53 = vcombine.high %v49, %v49
  %v56 = vsel %vm22, %v48, 0.0
  %v57 = vsel %vm22, %v52, 0.0
  %v58 = vadd.f32 %v56, %v57
  %59 = vadd.xlane.f32.xlu0 %v58
  %v60 = vpop.xlane.xlu0 %59
  %v61 = vsel %vm22, %v49, 0.0
  %v62 = vsel %vm22, %v53, 0.0
  %v63 = vadd.f32 %v61, %v62
  %64 = vadd.xlane.f32.xlu0 %v63
  %v65 = vpop.xlane.xlu0 %64
  %v66 = vsel %vm22, %v60, 0.0
  %v67 = vsel %vm22, %v65, 0.0
  %v68 = vadd.f32 %v66, %v67
  %v69 = vmul.f32 %v68, 0.001953125
  %v70 = vld [vmem:[%s1] sm:$0xf]
  %v71 = vadd.f32 %v69, 1e-05
  %v72 = vrsqrt.pop %v71
  %v73 = vmul.f32 %v70, %v72
  %v74 = vld [vmem:[%s2] sm:$0xf]
  %v75 = vmul.f32 %v36, %v73
  %v76 = vsub.f32 %v74, %v75
  %78 = vset.pattern.permute.xlu0 0
  %79 = vperm.xlu0 %78, %v73
  %v80 = vpop.permute.xlu0 %79
  %v82 = vunpack.c.l.s4 839922192
  %v83 = vunpack.c.0.s8 %v82
  %v84 = vlaneseq
  %v85 = vshrl.u32 %v84, 7
  %v86 = vsub.s32 %v83, %v85
  %v87 = vrot.slane %v80, %v86
  %v89 = vmul.f32 %v14, %v87
  %v90 = vmul.f32 %v15, %v87
  %92 = vset.pattern.permute.xlu0 0
  %93 = vperm.xlu0 %92, %v76
  %v94 = vpop.permute.xlu0 %93
  %v96 = vunpack.c.l.s4 839922192
  %v97 = vunpack.c.0.s8 %v96
  %v98 = vlaneseq
  %v99 = vshrl.u32 %v98, 7
  %v100 = vsub.s32 %v97, %v99
  %v101 = vrot.slane %v94, %v100
  %v103 = vadd.f32 %v89, %v101
  %v104 = vadd.f32 %v90, %v101
  %105 = vst [vmem:[%s3] sm:$0xff] %v103
  %106 = vst [vmem:[%s3 + $0x8] sm:$0xff] %v104
  // Predicated region
  $region14: #{conditional_batch_norm.1} parent=0 // pred_check
    _
  $region15: #{conditional_batch_norm.1} parent=0 // pred_check_branch
    %108 = sbr.rel (0) target = $region17
  $region16: #{conditional_batch_norm.1} parent=0 // pred_region
    _
  $region17: #{conditional_batch_norm.1} parent=0 // pred_fallthru
    _
  // Predicated region
  $region18: #{conditional_batch_norm.1} parent=0 // pred_check
    _
  $region19: #{conditional_batch_norm.1} parent=0 // pred_check_branch
    %110 = sbr.rel (0) target = $region21
  $region20: #{conditional_batch_norm.1} parent=0 // pred_region
    _
  $region21: #{conditional_batch_norm.1} parent=0 // pred_fallthru
    _

</llo_original>
